<compile_context>
chip_gen: v5e
topology: v5e:2x2
jax: 0.10.0
libtpu: 0.0.40
codegen_flags: <defaults>
</compile_context>

<pallas_src>
import functools
import math

import jax
import jax.numpy as jnp
from jax.experimental import pallas as pl
from jax.experimental.pallas import tpu as pltpu


_VMEM_LIMIT = 32 * 1024 * 1024   # safe scoped-VMEM budget on every TPU gen


def _pick_tile(dim, preferred, multiple):
    """Largest tile <= preferred that divides `dim` and is a multiple of
    `multiple`; otherwise fall back to the full dimension."""
    t = min(preferred, dim)
    t -= t % multiple
    while t >= multiple:
        if dim % t == 0:
            return t
        t -= multiple
    return dim


def _tile_and_pad(dim, preferred, multiple):
    """(tile, padded_dim). Large dims with no aligned divisor are zero-padded
    instead of using the whole dim as a single (VMEM-blowing) block."""
    t = _pick_tile(dim, preferred, multiple)
    if t == dim and dim > preferred:
        padded = -(-dim // preferred) * preferred
        return preferred, padded
    return t, dim


# ------------------------- tiled linear: y = x @ w + b -----------------------

def _linear_kernel(x_ref, w_ref, b_ref, o_ref, acc_ref):
    k = pl.program_id(2)

    @pl.when(k == 0)
    def _():
        acc_ref[...] = jnp.zeros_like(acc_ref)

    # bf16 MXU operands (native rate on all gens), f32 accumulation.
    acc_ref[...] += jnp.dot(x_ref[...].astype(jnp.bfloat16),
                            w_ref[...].astype(jnp.bfloat16),
                            preferred_element_type=jnp.float32)

    @pl.when(k == pl.num_programs(2) - 1)
    def _():
        o_ref[...] = (acc_ref[...] + b_ref[...].astype(jnp.float32)
                      ).astype(o_ref.dtype)


def pallas_linear(x2d, w_t, b):
    """y = x2d @ w_t + b, with w_t already laid out (K, N) (pre-transposed)."""
    M, K = x2d.shape
    N = w_t.shape[1]
    tm, Mp = _tile_and_pad(M, 256, 8)
    tn, Np = _tile_and_pad(N, 256, 128)
    tk, Kp = _tile_and_pad(K, 512, 128)
    if (Mp, Kp) != (M, K):
        x2d = jnp.pad(x2d, ((0, Mp - M), (0, Kp - K)))
    if (Kp, Np) != (K, N):
        w_t = jnp.pad(w_t, ((0, Kp - K), (0, Np - N)))
    b2d = (b if Np == N else jnp.pad(b, (0, Np - N))).reshape(1, Np)

    out = pl.pallas_call(
        _linear_kernel,
        out_shape=jax.ShapeDtypeStruct((Mp, Np), x2d.dtype),
        grid_spec=pltpu.PrefetchScalarGridSpec(
            num_scalar_prefetch=0,
            grid=(Mp // tm, Np // tn, Kp // tk),
            in_specs=[
                pl.BlockSpec((tm, tk), lambda i, j, k: (i, k)),
                pl.BlockSpec((tk, tn), lambda i, j, k: (k, j)),
                pl.BlockSpec((1, tn), lambda i, j, k: (0, j)),
            ],
            out_specs=pl.BlockSpec((tm, tn), lambda i, j, k: (i, j)),
            scratch_shapes=[pltpu.VMEM((tm, tn), jnp.float32)],
        ),
        compiler_params=pltpu.CompilerParams(
            dimension_semantics=("parallel", "parallel", "arbitrary"),
            vmem_limit_bytes=_VMEM_LIMIT),
    )(x2d, w_t, b2d)
    if (Mp, Np) != (M, N):
        out = out[:M, :N]
    return out


# ----------------------- flash-style causal attention ------------------------

def _flash_attn_kernel(q_ref, k_ref, v_ref, mask_ref, o_ref,
                       m_sc, l_sc, acc_sc, *, scale, tq, tk):
    """grid = (B, H//hb, T//tq); K/V refs hold the full (hb, T, D) panel,
    resident across qi; kv blocks are looped in-kernel with trip count qi+1
    (no dead grid steps above the causal diagonal)."""
    qi = pl.program_id(2)

    m_sc[...] = jnp.full_like(m_sc, -jnp.inf)
    l_sc[...] = jnp.zeros_like(l_sc)
    acc_sc[...] = jnp.zeros_like(acc_sc)

    # Scale q once per tile (hoisted out of the kv loop); bf16 MXU operand.
    q = (q_ref[0] * scale).astype(jnp.bfloat16)                    # (hb,tq,D)
    row = qi * tq + jax.lax.broadcasted_iota(jnp.int32, (tq, tk), 0)

    @pl.loop(0, qi + 1)                       # only kv blocks on/below diagonal
    def _(ki):
        start = pl.multiple_of(ki * tk, tk)
        k = k_ref[0, :, pl.ds(start, tk), :].astype(jnp.bfloat16)  # (hb,tk,D)
        v = v_ref[0, :, pl.ds(start, tk), :].astype(jnp.bfloat16)  # (hb,tk,D)
        kmask = mask_ref[0, :, pl.ds(start, tk)]                   # (1,tk)

        s = jnp.einsum('hqd,hkd->hqk', q, k,
                       preferred_element_type=jnp.float32)         # (hb,tq,tk)
        # causal + key-padding mask rebuilt from iota (no (T,T) mask DMA)
        col = start + jax.lax.broadcasted_iota(jnp.int32, (tq, tk), 1)
        valid = (row >= col) & (kmask != 0)
        s = jnp.where(valid[None], s, jnp.float32(-10000.0))

        m_prev = m_sc[...]
        m_new = jnp.maximum(m_prev, jnp.max(s, axis=-1, keepdims=True))
        alpha = jnp.exp(m_prev - m_new)
        p = jnp.exp(s - m_new)
        l_sc[...] = alpha * l_sc[...] + jnp.sum(p, axis=-1, keepdims=True)
        acc_sc[...] = alpha * acc_sc[...] + jnp.einsum(
            'hqk,hkd->hqd', p.astype(jnp.bfloat16), v,
            preferred_element_type=jnp.float32)
        m_sc[...] = m_new

    inv_l = pl.reciprocal(l_sc[...], approx=True)    # EUP, not VPU divide
    o_ref[0] = (acc_sc[...] * inv_l).astype(o_ref.dtype)


def pallas_attention(q, k, v, key_mask):
    """q,k,v: (B, H, T, D) f32; key_mask: (B, 1, T) int32 (1=keep, 0=mask)."""
    B, H, T, D = q.shape

    # Batch hb heads per block so a tile carries hb*D <= 128 lane work.
    hb = max(1, 128 // D) if D <= 128 else 1
    hb = min(hb, H)
    while H % hb:
        hb -= 1

    # 256 tiles match the v6e/v7x 256x256 MXU; fall back to 128 / full-T; pad
    # long non-128-multiple T instead of materializing a (T,T) score block.
    if T % 256 == 0:
        tq = tk = 256
    elif T % 128 == 0:
        tq = tk = 128
    elif T <= 256:
        tq = tk = T
    else:
        tq = tk = 128
    Tp = -(-T // tq) * tq
    if Tp != T:
        pad = ((0, 0), (0, 0), (0, Tp - T), (0, 0))
        q, k, v = jnp.pad(q, pad), jnp.pad(k, pad), jnp.pad(v, pad)
        key_mask = jnp.pad(key_mask, ((0, 0), (0, 0), (0, Tp - T)))

    scale = 1.0 / math.sqrt(D)
    kernel = functools.partial(_flash_attn_kernel, scale=scale, tq=tq, tk=tk)

    out = pl.pallas_call(
        kernel,
        out_shape=jax.ShapeDtypeStruct((B, H, Tp, D), q.dtype),
        grid_spec=pltpu.PrefetchScalarGridSpec(
            num_scalar_prefetch=0,
            grid=(B, H // hb, Tp // tq),
            in_specs=[
                pl.BlockSpec((1, hb, tq, D), lambda b, hg, qi: (b, hg, qi, 0)),
                # K/V: full-T panel, block index constant across qi -> DMA'd
                # once per (b, head-group) and kept resident in VMEM.
                pl.BlockSpec((1, hb, Tp, D), lambda b, hg, qi: (b, hg, 0, 0)),
                pl.BlockSpec((1, hb, Tp, D), lambda b, hg, qi: (b, hg, 0, 0)),
                pl.BlockSpec((1, 1, Tp), lambda b, hg, qi: (b, 0, 0)),
            ],
            out_specs=pl.BlockSpec((1, hb, tq, D),
                                   lambda b, hg, qi: (b, hg, qi, 0)),
            scratch_shapes=[
                pltpu.VMEM((hb, tq, 1), jnp.float32),   # running max m
                pltpu.VMEM((hb, tq, 1), jnp.float32),   # running denom l
                pltpu.VMEM((hb, tq, D), jnp.float32),   # running output acc
            ],
        ),
        compiler_params=pltpu.CompilerParams(
            dimension_semantics=("parallel", "parallel", "arbitrary"),
            vmem_limit_bytes=_VMEM_LIMIT),
    )(q, k, v, key_mask)
    return out[:, :, :T, :] if Tp != T else out


# ------------------------------ model wrapper --------------------------------

def init_params(key, n_embd):
    ks = jax.random.split(key, 6)
    std = 0.02
    return {
        "w_q":    jax.random.normal(ks[0], (n_embd, n_embd), jnp.float32) * std,
        "b_q":    jax.random.normal(ks[1], (n_embd,), jnp.float32) * std,
        "w_kv":   jax.random.normal(ks[2], (2 * n_embd, n_embd), jnp.float32) * std,
        "b_kv":   jax.random.normal(ks[3], (2 * n_embd,), jnp.float32) * std,
        "w_proj": jax.random.normal(ks[4], (n_embd, n_embd), jnp.float32) * std,
        "b_proj": jax.random.normal(ks[5], (n_embd,), jnp.float32) * std,
    }


def prepare_params(params):
    """One-time weight prep (fused QKV + transposes) hoisted out of the
    per-call forward path."""
    return {
        "w_qkv_t": jnp.concatenate([params["w_q"], params["w_kv"]], axis=0).T,
        "b_qkv":   jnp.concatenate([params["b_q"], params["b_kv"]], axis=0),
        "w_proj_t": params["w_proj"].T,
        "b_proj":   params["b_proj"],
    }


def causal_self_attention(hidden_states, attention_mask, prepared, *, n_head,
                          n_positions):
    B, T, E = hidden_states.shape
    assert T <= n_positions
    H = n_head
    D = E // H

    x2d = hidden_states.reshape(B * T, E)
    qkv = pallas_linear(x2d, prepared["w_qkv_t"], prepared["b_qkv"])  # (B*T,3E)
    q, k, v = qkv[:, :E], qkv[:, E:2 * E], qkv[:, 2 * E:]

    def split_heads(t):
        return t.reshape(B, T, H, D).transpose(0, 2, 1, 3)   # (B, H, T, D)

    qh, kh, vh = split_heads(q), split_heads(k), split_heads(v)

    # attention_mask is the (B, 1, 1, T) key mask the PyTorch module multiplies
    # with the causal buffer; the causal part is rebuilt in-kernel from iota.
    key_mask = jnp.broadcast_to(attention_mask, (B, 1, 1, T))
    key_mask = key_mask.reshape(B, 1, T).astype(jnp.int32)

    oh = pallas_attention(qh, kh, vh, key_mask)               # (B, H, T, D)
    merged = oh.transpose(0, 2, 1, 3).reshape(B * T, E)
    out = pallas_linear(merged, prepared["w_proj_t"], prepared["b_proj"])
    return out.reshape(B, T, E)


# --------------------------- pure-JAX reference ------------------------------

def reference(hidden_states, attention_mask, params, *, n_head, n_positions):
    B, T, E = hidden_states.shape
    D = E // n_head
    causal = jnp.tril(jnp.ones((n_positions, n_positions), jnp.int32))[None, None]
    mask = attention_mask.astype(jnp.int32) * causal[:, :, :T, :T]

    q = hidden_states @ params["w_q"].T + params["b_q"]
    kv = hidden_states @ params["w_kv"].T + params["b_kv"]
    k, v = kv[..., :E], kv[..., E:]

    def split_heads(t):
        return t.reshape(B, T, n_head, D).transpose(0, 2, 1, 3)

    qh, kh, vh = split_heads(q), split_heads(k), split_heads(v)
    s = jnp.einsum("bhqd,bhkd->bhqk", qh, kh) / (float(D) ** 0.5)
    s = jnp.where(mask != 0, s, jnp.float32(-10000.0))
    w = jax.nn.softmax(s, axis=-1)
    o = jnp.einsum("bhqk,bhkd->bhqd", w, vh)
    o = o.transpose(0, 2, 1, 3).reshape(B, T, E)
    return o @ params["w_proj"].T + params["b_proj"]


# ----------------------------------- main ------------------------------------

if __name__ == "__main__":
    B, T, n_embd, n_head, n_positions = 2, 8, 32, 4, 16

    key = jax.random.PRNGKey(0)
    k_x, k_p = jax.random.split(key)
    hidden_states = jax.random.normal(k_x, (B, T, n_embd), jnp.float32)
    attention_mask = jnp.ones((B, 1, 1, T), jnp.int32)
    params = init_params(k_p, n_embd)
    prepared = prepare_params(params)

    out = causal_self_attention(hidden_states, attention_mask, prepared,
                                n_head=n_head, n_positions=n_positions)
    out = jax.block_until_ready(out)

    ref = reference(hidden_states, attention_mask, params,
                    n_head=n_head, n_positions=n_positions)
    assert out.shape == (B, T, n_embd)
    # bf16 MXU operands (f32 accumulation) are a deliberate numerics trade;
    # tolerance reflects that while still validating the forward pass.
    assert jnp.allclose(out, ref, atol=2e-3, rtol=2e-3), (
        float(jnp.max(jnp.abs(out - ref))))
    print("KERNEL_OK")
</pallas_src>

<mosaic_0001>
module attributes {stable_mosaic.version = 11 : i64} {
  func.func @_linear_kernel(%arg0: i32, %arg1: i32, %arg2: i32, %arg3: memref<16x32xf32, #tpu.memory_space<vmem>>, %arg4: memref<32x96xf32, #tpu.memory_space<vmem>>, %arg5: memref<1x96xf32, #tpu.memory_space<vmem>>, %arg6: memref<16x96xf32, #tpu.memory_space<vmem>>, %arg7: memref<16x96xf32, #tpu.memory_space<vmem>>) attributes {dimension_semantics = [#tpu.dimension_semantics<parallel>, #tpu.dimension_semantics<parallel>, #tpu.dimension_semantics<arbitrary>], iteration_bounds = array<i64: 1, 1, 1>, scalar_prefetch = 0 : i64, scratch_operands = 1 : i64, tpu.core_type = #tpu.core_type<tc>, window_params = [{transform_indices = @transform_0, window_bounds = array<i64: 16, 32>}, {transform_indices = @transform_1, window_bounds = array<i64: 32, 96>}, {transform_indices = @transform_2, window_bounds = array<i64: 1, 96>}, {transform_indices = @transform_3, window_bounds = array<i64: 16, 96>}]} {
    %c0_i32 = arith.constant 0 : i32
    %0 = arith.cmpi eq, %arg2, %c0_i32 : i32
    %1 = arith.extui %0 : i1 to i32
    %c0_i32_0 = arith.constant 0 : i32
    %2 = arith.cmpi ne, %1, %c0_i32_0 : i32
    scf.if %2 {
      %cst_10 = arith.constant 0.000000e+00 : f32
      %14 = vector.broadcast %cst_10 : f32 to vector<16x96xf32>
      %c0_11 = arith.constant 0 : index
      %c0_12 = arith.constant 0 : index
      %15 = vector.load %arg7[%c0_11, %c0_12] : memref<16x96xf32, #tpu.memory_space<vmem>>, vector<16x96xf32>
      tpu.vector_store %arg7[%c0_11, %c0_12], %14 {strides = array<i32>} : memref<16x96xf32, #tpu.memory_space<vmem>>, vector<16x96xf32>,
    } else {
    }
    %c0 = arith.constant 0 : index
    %c0_1 = arith.constant 0 : index
    %3 = vector.load %arg7[%c0, %c0_1] : memref<16x96xf32, #tpu.memory_space<vmem>>, vector<16x96xf32>
    %c0_2 = arith.constant 0 : index
    %c0_3 = arith.constant 0 : index
    %4 = vector.load %arg3[%c0_2, %c0_3] : memref<16x32xf32, #tpu.memory_space<vmem>>, vector<16x32xf32>
    %5 = arith.truncf %4 : vector<16x32xf32> to vector<16x32xbf16>
    %c0_4 = arith.constant 0 : index
    %c0_5 = arith.constant 0 : index
    %6 = vector.load %arg4[%c0_4, %c0_5] : memref<32x96xf32, #tpu.memory_space<vmem>>, vector<32x96xf32>
    %7 = arith.truncf %6 : vector<32x96xf32> to vector<32x96xbf16>
    %cst = arith.constant dense<0.000000e+00> : vector<16x96xf32>
    %8 = tpu.matmul %5, %7, %cst {dimension_numbers = #tpu.dot_dimension_numbers<[1], [0], [0], [1], [0, 0, 1, 1], [], []>} : vector<16x32xbf16>, vector<32x96xbf16>, vector<16x96xf32> -> vector<16x96xf32>
    %9 = arith.addf %3, %8 : vector<16x96xf32>
    %c0_6 = arith.constant 0 : index
    %c0_7 = arith.constant 0 : index
    %10 = vector.load %arg7[%c0_6, %c0_7] : memref<16x96xf32, #tpu.memory_space<vmem>>, vector<16x96xf32>
    tpu.vector_store %arg7[%c0_6, %c0_7], %9 {strides = array<i32>} : memref<16x96xf32, #tpu.memory_space<vmem>>, vector<16x96xf32>,
    %c0_i32_8 = arith.constant 0 : i32
    %11 = arith.cmpi eq, %arg2, %c0_i32_8 : i32
    %12 = arith.extui %11 : i1 to i32
    %c0_i32_9 = arith.constant 0 : i32
    %13 = arith.cmpi ne, %12, %c0_i32_9 : i32
    scf.if %13 {
      %c0_10 = arith.constant 0 : index
      %c0_11 = arith.constant 0 : index
      %14 = vector.load %arg7[%c0_10, %c0_11] : memref<16x96xf32, #tpu.memory_space<vmem>>, vector<16x96xf32>
      %c0_12 = arith.constant 0 : index
      %c0_13 = arith.constant 0 : index
      %15 = vector.load %arg5[%c0_12, %c0_13] : memref<1x96xf32, #tpu.memory_space<vmem>>, vector<1x96xf32>
      %16 = vector.broadcast %15 : vector<1x96xf32> to vector<16x96xf32>
      %17 = arith.addf %14, %16 : vector<16x96xf32>
      %c0_14 = arith.constant 0 : index
      %c0_15 = arith.constant 0 : index
      %18 = vector.load %arg6[%c0_14, %c0_15] : memref<16x96xf32, #tpu.memory_space<vmem>>, vector<16x96xf32>
      tpu.vector_store %arg6[%c0_14, %c0_15], %17 {strides = array<i32>} : memref<16x96xf32, #tpu.memory_space<vmem>>, vector<16x96xf32>,
    } else {
    }
    return
  }
  func.func @transform_0(%arg0: i32, %arg1: i32, %arg2: i32) -> (i32, i32) {
    %c0_i32 = arith.constant 0 : i32
    return %arg0, %arg2 : i32, i32
  }
  func.func @transform_1(%arg0: i32, %arg1: i32, %arg2: i32) -> (i32, i32) {
    %c0_i32 = arith.constant 0 : i32
    return %arg2, %arg1 : i32, i32
  }
  func.func @transform_2(%arg0: i32, %arg1: i32, %arg2: i32) -> (i32, i32) {
    %c0_i32 = arith.constant 0 : i32
    %c0_i32_0 = arith.constant 0 : i32
    return %c0_i32, %arg1 : i32, i32
  }
  func.func @transform_3(%arg0: i32, %arg1: i32, %arg2: i32) -> (i32, i32) {
    %c0_i32 = arith.constant 0 : i32
    return %arg0, %arg1 : i32, i32
  }
}

</mosaic_0001>

<llo_original>
// kernel: tpu_custom_call.1
$region0: #{tpu_custom_call.1}
  #allocation0 [shape = 'u32[]', space=smem, size = 0x4, offset = 0x4, fixed_abs, tag = 'smem constant byte address 0x4 - core index']
  #allocation1 [shape = 'u32[72,128]{1,0:T(1,128)}', space=vmem, size = 0x9000, scoped, tag = 'internal scratch']
  #allocation2 [shape = 'f32[16,96]{1,0:T(8,128)}', space=vmem, size = 0x2000, scoped, tag = 'scratch operand']
  %s0 = inlined_call_operand.hbm [shape: f32[16,32], index: 0, kind: input, shape index: {}]
  %s1 = inlined_call_operand.hbm [shape: f32[32,96], index: 1, kind: input, shape index: {}]
  %s2 = inlined_call_operand.vmem [shape: f32[1,96], index: 2, kind: input, shape index: {}]
  %s3 = inlined_call_operand.hbm [shape: f32[16,96], index: 3, kind: output, shape index: {}]
  %s4 = sld [smem:[#allocation0]]
  $region38: #{tpu_custom_call.1} parent=0
    _
  %s6 = ssub.s32 1, %s4
  %s7 = scalar_select 0, %s6, %s4
  $region1: #{tpu_custom_call.1} parent=0
    #allocation3 [shape = 'u8[8192]{0}', space=vmem, size = 0x2000, scoped, tag = 'input window, operand 0, single buffered']
    #allocation4 [shape = 's32[1]{0}', space=sflag, size = 0x4, scoped, tag = 'scoped memory for tpu_custom_call.1']
    #allocation5 [shape = 's32[1]{0}', space=sflag, size = 0x4, scoped, tag = 'scoped memory for tpu_custom_call.1']
    #allocation6 [shape = 'u8[16384]{0}', space=vmem, size = 0x4000, scoped, tag = 'input window, operand 1, single buffered']
    #allocation7 [shape = 's32[1]{0}', space=sflag, size = 0x4, scoped, tag = 'scoped memory for tpu_custom_call.1']
    #allocation8 [shape = 'u8[8192]{0}', space=vmem, size = 0x2000, scoped, tag = 'output window, operand 0, single buffered']
    %8 = vsyncpa [#allocation4], 0
    %9 = vsyncpa [#allocation7], 0
    %10 = vsyncpa [#allocation5], 0
    // Predicated region
    $region2: #{tpu_custom_call.1} parent=1 // pred_check
      _
    $region3: #{tpu_custom_call.1} parent=1 // pred_check_branch
      %12 = sbr.rel (0) target = $region5
    $region4: #{tpu_custom_call.1} parent=1 // pred_region
      %14 = vsyncadd [#allocation4], 0
      %s15 = sshll.u32 %s0, 4
      %s16 = int_to_ptr.hbm [resolvable:$true] %s15
      %s17 = sshll.u32 [#allocation3], 4
      %s18 = int_to_ptr.vmem [resolvable:$true] %s17
      %23 = dma.hbm_to_vmem [thread:$0]  %s16, 256, %s18, [#allocation4], 128, 128, 8
    $region5: #{tpu_custom_call.1} parent=1 // pred_fallthru
      _
    // Predicated region
    $region6: #{tpu_custom_call.1} parent=1 // pred_check
      _
    $region7: #{tpu_custom_call.1} parent=1 // pred_check_branch
      %25 = sbr.rel (0) target = $region9
    $region8: #{tpu_custom_call.1} parent=1 // pred_region
      %27 = vsyncadd [#allocation7], 0
      %s28 = sshll.u32 %s1, 4
      %s29 = int_to_ptr.hbm [resolvable:$true] %s28
      %s30 = sshll.u32 [#allocation6], 4
      %s31 = int_to_ptr.vmem [resolvable:$true] %s30
      %36 = dma.hbm_to_vmem [thread:$0]  %s29, 512, %s31, [#allocation7], 128, 128, 8
    $region9: #{tpu_custom_call.1} parent=1 // pred_fallthru
      _
    // Predicated region
    $region10: #{tpu_custom_call.1} parent=1 // pred_check
      _
    $region11: #{tpu_custom_call.1} parent=1 // pred_check_branch
      %38 = sbr.rel (0) target = $region13
    $region12: #{tpu_custom_call.1} parent=1 // pred_region
      _
    $region13: #{tpu_custom_call.1} parent=1 // pred_fallthru
      _
    // Predicated region
    $region14: #{tpu_custom_call.1} parent=1 // pred_check
      _
    $region15: #{tpu_custom_call.1} parent=1 // pred_check_branch
      %40 = sbr.rel (0) target = $region17
    $region16: #{tpu_custom_call.1} parent=1 // pred_region
      %42 = dma.done [#allocation4], 256
    $region17: #{tpu_custom_call.1} parent=1 // pred_fallthru
      _
    // Predicated region
    $region18: #{tpu_custom_call.1} parent=1 // pred_check
      _
    $region19: #{tpu_custom_call.1} parent=1 // pred_check_branch
      %44 = sbr.rel (0) target = $region21
    $region20: #{tpu_custom_call.1} parent=1 // pred_region
      %46 = dma.done [#allocation7], 512
    $region21: #{tpu_custom_call.1} parent=1 // pred_fallthru
      _
    %p48 = scmp.eq.s32.totalorder 0, 0
    // Predicated region
    $region22: #{tpu_custom_call.1} parent=1 // pred_check
      %p49 = pneg %p48
    $region23: #{tpu_custom_call.1} parent=1 // pred_check_branch
      %51 = sbr.rel (%p49) target = $region25
    $region24: #{tpu_custom_call.1} parent=1 // pred_region
      %vm52 = vcmask 785408
      %53 = vst.msk [vmem:[#allocation2] sm:$0xff] %vm52, 0.0
      %54 = vst.msk [vmem:[#allocation2 + $0x8] sm:$0xff] %vm52, 0.0
    $region25: #{tpu_custom_call.1} parent=1 // pred_fallthru
      _
    %v55 = vld [vmem:[#allocation2] sm:$0xff]
    %v56 = vld [vmem:[#allocation2 + $0x8] sm:$0xff]
    %v57 = vld [vmem:[#allocation3] sm:$0xff]
    %v58 = vld [vmem:[#allocation3 + $0x8] sm:$0xff]
    %v59 = vpack.c.bf16 %v58, %v57
    %v60 = vld [vmem:[#allocation6] sm:$0xff]
    %v61 = vld [vmem:[#allocation6 + $0x8] sm:$0xff]
    %v62 = vld [vmem:[#allocation6 + $0x10] sm:$0xff]
    %v63 = vld [vmem:[#allocation6 + $0x18] sm:$0xff]
    %v64 = vpack.c.bf16 %v61, %v60
    %v65 = vpack.c.bf16 %v63, %v62
    %vm66 = vcmask 261120
    %v68 = vsel %vm66, %v59, 0
    %70 = vmatpush.bf16.msra.mxu0 0
    %71 = vmatpush.bf16.msra.mxu0 0
    %72 = vmatpush.bf16.msra.mxu0 0
    %73 = vmatpush.bf16.msra.mxu0 0
    %74 = vmatpush.bf16.msra.mxu0 0
    %75 = vmatpush.bf16.msra.mxu0 0
    %76 = vmatpush.bf16.msra.mxu0 %v65
    %77 = vmatpush.bf16.msra.mxu0 %v64
    %78 = vmatmul.bf16.gmra.mxu0 %v68
    %v79 = vpop.f32.mrf.mxu0
    %v80 = vadd.f32 0.0, %v79
    %v81 = vpop.f32.mrf.mxu0
    %v82 = vadd.f32 0.0, %v81
    %83 = vdwg.mxu0
    %v84 = vadd.f32 %v55, %v80
    %v85 = vadd.f32 %v56, %v82
    %vm86 = vcmask 785408
    %87 = vst.msk [vmem:[#allocation2] sm:$0xff] %vm86, %v84
    %88 = vst.msk [vmem:[#allocation2 + $0x8] sm:$0xff] %vm86, %v85
    // Predicated region
    $region26: #{tpu_custom_call.1} parent=1 // pred_check
      %p89 = pneg %p48
    $region27: #{tpu_custom_call.1} parent=1 // pred_check_branch
      %91 = sbr.rel (%p89) target = $region29
    $region28: #{tpu_custom_call.1} parent=1 // pred_region
      %v92 = vld [vmem:[#allocation2] sm:$0xff]
      %v93 = vld [vmem:[#allocation2 + $0x8] sm:$0xff]
      %v94 = vld [vmem:[%s2] sm:$0x1]
      %v96 = vperm.slane %v94, 0
      %v98 = vadd.f32 %v92, %v96
      %v99 = vadd.f32 %v93, %v96
      %100 = vst.msk [vmem:[#allocation8] sm:$0xff] %vm86, %v98
      %101 = vst.msk [vmem:[#allocation8 + $0x8] sm:$0xff] %vm86, %v99
    $region29: #{tpu_custom_call.1} parent=1 // pred_fallthru
      _
    // Predicated region
    $region30: #{tpu_custom_call.1} parent=1 // pred_check
      _
    $region31: #{tpu_custom_call.1} parent=1 // pred_check_branch
      %103 = sbr.rel (0) target = $region33
    $region32: #{tpu_custom_call.1} parent=1 // pred_region
      %105 = vsyncadd [#allocation5], 0
      %s106 = sshll.u32 [#allocation8], 4
      %s107 = int_to_ptr.vmem [resolvable:$true] %s106
      %s108 = sshll.u32 %s3, 4
      %s109 = int_to_ptr.hbm [resolvable:$true] %s108
      %114 = dma.vmem_to_hbm [thread:$0]  %s107, 256, %s109, [#allocation5], 128, 128, 8
    $region33: #{tpu_custom_call.1} parent=1 // pred_fallthru
      _
    // Predicated region
    $region34: #{tpu_custom_call.1} parent=1 // pred_check
      _
    $region35: #{tpu_custom_call.1} parent=1 // pred_check_branch
      %116 = sbr.rel (0) target = $region37
    $region36: #{tpu_custom_call.1} parent=1 // pred_region
      %118 = dma.done [#allocation5], 256
    $region37: #{tpu_custom_call.1} parent=1 // pred_fallthru
      _
    %119 = vsyncpa [#allocation4], 1
    %120 = vsyncpa [#allocation7], 1
    %121 = vsyncpa [#allocation5], 1

</llo_original>
